<compile_context>
chip_gen: v7x
topology: tpu7x:2x2x1
jax: 0.10.0
libtpu: 0.0.40
codegen_flags: <defaults>
</compile_context>

<pallas_src>
import jax
import jax.numpy as jnp
from jax.experimental import pallas as pl
from jax.experimental.pallas import tpu as pltpu


def _round_up(x, m):
    return ((x + m - 1) // m) * m


def encoder_kernel(x_ref, w1_ref, b1_ref, w2_ref, bfc_ref, o_ref):
    # x_ref:   (tile_r, 128)  -- 4 samples packed per lane-dense row
    # w1_ref:  (128, 16)      -- block-diag conv weights (resident)
    # b1_ref:  (1, 16)        -- tiled conv bias
    # w2_ref:  (16, 4)        -- block-diag fc weights
    # bfc_ref: (1, 1)         -- fc bias
    # o_ref:   (tile_r, 4)    -- 4 samples' scalar outputs per row
    x = x_ref[...]

    # Conv1d (single output position) for all 4 packed samples: one MXU matmul,
    # f32 accumulation.
    h = jnp.dot(x, w1_ref[...], preferred_element_type=jnp.float32)  # (tile_r, 16)
    h = h + b1_ref[...]
    h = jnp.where(h >= 0.0, h, 0.2 * h)  # LeakyReLU(0.2)

    # fc (4 -> 1) for all 4 packed samples: second tiny MXU matmul (hidden
    # under the input DMA; this kernel is HBM-bound).
    y = jnp.dot(h, w2_ref[...], preferred_element_type=jnp.float32)  # (tile_r, 4)
    o_ref[...] = (y + bfc_ref[...]).astype(o_ref.dtype)


def encoder_forward(x_ncl, w_conv, b_conv, w_fc, b_fc, *, tile_n=32768):
    """x_ncl: (N, 8, 4) (NCL, like PyTorch Conv1d input). Returns (N, 1) f32."""
    N, C_in, L = x_ncl.shape
    assert C_in == 8 and L == 4, "Encoder requires input (N, 8, 4)"
    C_out = 4
    CK = C_in * L          # 32 flattened conv taps
    G = 128 // CK          # 4 samples packed per 128-lane row

    # Pad the batch up to a multiple of G so the free row-major collapse below
    # is valid (no-op for the common case N % 4 == 0).
    n_eff = _round_up(N, G)
    if n_eff != N:
        x_ncl = jnp.pad(x_ncl, ((0, n_eff - N), (0, 0), (0, 0)))
    R = n_eff // G

    # Pure row-major collapse: (N, 8, 4) -> (N/4, 128).  This is a bitcast-style
    # reshape (contiguous), not a transpose -- no extra HBM pass over x.
    x2 = x_ncl.reshape(R, G * CK)
    in_dt = x2.dtype

    # Fold conv + fc params into tiny block-diagonal matrices (host side, <10 KiB).
    # PyTorch Conv1d weight layout (C_out, C_in, K) flattens row-major to match
    # the (c, k) flatten of x above.
    w_flat_t = w_conv.reshape(C_out, CK).T.astype(jnp.float32)             # (32, 4)
    eye_g = jnp.eye(G, dtype=jnp.float32)
    w1 = jnp.kron(eye_g, w_flat_t).astype(in_dt)                           # (128, 16)
    b1 = jnp.tile(b_conv.astype(jnp.float32), G).reshape(1, G * C_out)     # (1, 16)
    w2 = jnp.kron(eye_g, w_fc.reshape(C_out, 1).astype(jnp.float32))       # (16, 4)
    b_fc2 = b_fc.reshape(1, 1).astype(jnp.float32)                         # (1, 1)

    # Row tile: tile_n samples -> tile_n / 4 rows, multiple of 8 (sublane).
    tile_r = max(8, (tile_n // G) // 8 * 8)
    # Keep the double-buffered input under ~12 MiB so we fit v5e's 16 MiB
    # default scoped VMEM (v6e/v7x have more headroom) without vmem_limit_bytes.
    max_rows = (12 * 1024 * 1024) // (2 * (G * CK) * x2.dtype.itemsize)
    tile_r = max(8, min(tile_r, (max_rows // 8) * 8))
    # Don't make the block (much) larger than the array itself.
    tile_r = min(tile_r, _round_up(R, 8))

    grid = (pl.cdiv(R, tile_r),)  # non-divisible grid: tail block write-masked

    out = pl.pallas_call(
        encoder_kernel,
        out_shape=jax.ShapeDtypeStruct((R, G), jnp.float32),
        grid=grid,
        in_specs=[
            pl.BlockSpec((tile_r, G * CK), lambda i: (i, 0)),     # x: streamed
            pl.BlockSpec((G * CK, G * C_out), lambda i: (0, 0)),  # weights resident
            pl.BlockSpec((1, G * C_out), lambda i: (0, 0)),
            pl.BlockSpec((G * C_out, G), lambda i: (0, 0)),
            pl.BlockSpec((1, 1), lambda i: (0, 0)),
        ],
        out_specs=pl.BlockSpec((tile_r, G), lambda i: (i, 0)),
        compiler_params=pltpu.CompilerParams(
            # "parallel" lets v7x shard the batch axis across its 2 TensorCores;
            # near-neutral (but harmless) on single-TC v5e/v6e.
            dimension_semantics=("parallel",),
        ),
    )(x2, w1, b1, w2, b_fc2)

    # Free row-major expansion back to one scalar per sample, drop pad rows.
    return out.reshape(n_eff, 1)[:N]


def encoder_reference(x_ncl, w_conv, b_conv, w_fc, b_fc):
    """Pure-JAX reference matching PyTorch semantics (L=4 -> conv out length 1)."""
    h = jnp.einsum("ncl,ocl->no", x_ncl, w_conv) + b_conv[None, :]
    h = jnp.where(h >= 0.0, h, 0.2 * h)
    return h @ w_fc.T + b_fc[None, :]


if __name__ == "__main__":
    key = jax.random.PRNGKey(0)
    k_x, k_wc, k_bc, k_wf, k_bf = jax.random.split(key, 5)

    # N=300 with tile_n=128 -> 75 packed rows, tile_r=32 -> a 3-step grid with a
    # partial (write-masked) final block, exercising the non-divisible grid path.
    N, C_in, C_out, K = 300, 8, 4, 4

    x = jax.random.normal(k_x, (N, C_in, K), dtype=jnp.float32)            # (N, 8, 4)
    w_conv = 0.1 * jax.random.normal(k_wc, (C_out, C_in, K), jnp.float32)  # (4, 8, 4)
    b_conv = 0.1 * jax.random.normal(k_bc, (C_out,), jnp.float32)          # (4,)
    w_fc = 0.1 * jax.random.normal(k_wf, (1, C_out), jnp.float32)          # (1, 4)
    b_fc = 0.1 * jax.random.normal(k_bf, (1,), jnp.float32)                # (1,)

    out = encoder_forward(x, w_conv, b_conv, w_fc, b_fc, tile_n=128)
    out = jax.block_until_ready(out)

    ref = encoder_reference(x, w_conv, b_conv, w_fc, b_fc)
    assert out.shape == (N, 1), out.shape
    assert jnp.allclose(out, ref, atol=1e-5, rtol=1e-5), (out, ref)

    print("KERNEL_OK")
</pallas_src>

<mosaic_0001>
module attributes {stable_mosaic.version = 11 : i64} {
  func.func @encoder_kernel(%arg0: i32, %arg1: memref<32x128xf32, #tpu.memory_space<vmem>>, %arg2: memref<128x16xf32, #tpu.memory_space<vmem>>, %arg3: memref<1x16xf32, #tpu.memory_space<vmem>>, %arg4: memref<16x4xf32, #tpu.memory_space<vmem>>, %arg5: memref<1x1xf32, #tpu.memory_space<vmem>>, %arg6: memref<32x4xf32, #tpu.memory_space<vmem>>) attributes {dimension_semantics = [#tpu.dimension_semantics<parallel>], iteration_bounds = array<i64: 3>, scalar_prefetch = 0 : i64, scratch_operands = 0 : i64, tpu.core_type = #tpu.core_type<tc>, window_params = [{transform_indices = @transform_0, window_bounds = array<i64: 32, 128>}, {pipeline_mode = #tpu.pipeline_mode<synchronous>, transform_indices = @transform_1, window_bounds = array<i64: 128, 16>}, {pipeline_mode = #tpu.pipeline_mode<synchronous>, transform_indices = @transform_2, window_bounds = array<i64: 1, 16>}, {pipeline_mode = #tpu.pipeline_mode<synchronous>, transform_indices = @transform_3, window_bounds = array<i64: 16, 4>}, {pipeline_mode = #tpu.pipeline_mode<synchronous>, transform_indices = @transform_4, window_bounds = array<i64: 1, 1>}, {transform_indices = @transform_5, window_bounds = array<i64: 32, 4>}]} {
    %c0 = arith.constant 0 : index
    %c0_0 = arith.constant 0 : index
    %0 = vector.load %arg1[%c0, %c0_0] : memref<32x128xf32, #tpu.memory_space<vmem>>, vector<32x128xf32>
    %c0_1 = arith.constant 0 : index
    %c0_2 = arith.constant 0 : index
    %1 = vector.load %arg2[%c0_1, %c0_2] : memref<128x16xf32, #tpu.memory_space<vmem>>, vector<128x16xf32>
    %cst = arith.constant dense<0.000000e+00> : vector<32x16xf32>
    %2 = tpu.matmul %0, %1, %cst {dimension_numbers = #tpu.dot_dimension_numbers<[1], [0], [0], [1], [0, 0, 1, 1], [], []>} : vector<32x128xf32>, vector<128x16xf32>, vector<32x16xf32> -> vector<32x16xf32>
    %c0_3 = arith.constant 0 : index
    %c0_4 = arith.constant 0 : index
    %3 = vector.load %arg3[%c0_3, %c0_4] : memref<1x16xf32, #tpu.memory_space<vmem>>, vector<1x16xf32>
    %4 = vector.broadcast %3 : vector<1x16xf32> to vector<32x16xf32>
    %5 = arith.addf %2, %4 : vector<32x16xf32>
    %cst_5 = arith.constant 0.000000e+00 : f32
    %6 = vector.broadcast %cst_5 : f32 to vector<32x16xf32>
    %7 = arith.cmpf oge, %5, %6 : vector<32x16xf32>
    %cst_6 = arith.constant 2.000000e-01 : f32
    %8 = vector.broadcast %cst_6 : f32 to vector<32x16xf32>
    %9 = arith.mulf %8, %5 : vector<32x16xf32>
    %10 = arith.select %7, %5, %9 : vector<32x16xi1>, vector<32x16xf32>
    %c0_7 = arith.constant 0 : index
    %c0_8 = arith.constant 0 : index
    %11 = vector.load %arg4[%c0_7, %c0_8] : memref<16x4xf32, #tpu.memory_space<vmem>>, vector<16x4xf32>
    %cst_9 = arith.constant dense<0.000000e+00> : vector<32x4xf32>
    %12 = tpu.matmul %10, %11, %cst_9 {dimension_numbers = #tpu.dot_dimension_numbers<[1], [0], [0], [1], [0, 0, 1, 1], [], []>} : vector<32x16xf32>, vector<16x4xf32>, vector<32x4xf32> -> vector<32x4xf32>
    %c0_10 = arith.constant 0 : index
    %c0_11 = arith.constant 0 : index
    %13 = vector.load %arg5[%c0_10, %c0_11] : memref<1x1xf32, #tpu.memory_space<vmem>>, vector<1x1xf32>
    %14 = vector.broadcast %13 : vector<1x1xf32> to vector<32x4xf32>
    %15 = arith.addf %12, %14 : vector<32x4xf32>
    %c0_12 = arith.constant 0 : index
    %c0_13 = arith.constant 0 : index
    %16 = vector.load %arg6[%c0_12, %c0_13] : memref<32x4xf32, #tpu.memory_space<vmem>>, vector<32x4xf32>
    tpu.vector_store %arg6[%c0_12, %c0_13], %15 {strides = array<i32>} : memref<32x4xf32, #tpu.memory_space<vmem>>, vector<32x4xf32>,
    return
  }
  func.func @transform_0(%arg0: i32) -> (i32, i32) {
    %c0_i32 = arith.constant 0 : i32
    %c0_i32_0 = arith.constant 0 : i32
    return %arg0, %c0_i32 : i32, i32
  }
  func.func @transform_1(%arg0: i32) -> (i32, i32) {
    %c0_i32 = arith.constant 0 : i32
    %c0_i32_0 = arith.constant 0 : i32
    %c0_i32_1 = arith.constant 0 : i32
    return %c0_i32, %c0_i32_0 : i32, i32
  }
  func.func @transform_2(%arg0: i32) -> (i32, i32) {
    %c0_i32 = arith.constant 0 : i32
    %c0_i32_0 = arith.constant 0 : i32
    %c0_i32_1 = arith.constant 0 : i32
    return %c0_i32, %c0_i32_0 : i32, i32
  }
  func.func @transform_3(%arg0: i32) -> (i32, i32) {
    %c0_i32 = arith.constant 0 : i32
    %c0_i32_0 = arith.constant 0 : i32
    %c0_i32_1 = arith.constant 0 : i32
    return %c0_i32, %c0_i32_0 : i32, i32
  }
  func.func @transform_4(%arg0: i32) -> (i32, i32) {
    %c0_i32 = arith.constant 0 : i32
    %c0_i32_0 = arith.constant 0 : i32
    %c0_i32_1 = arith.constant 0 : i32
    return %c0_i32, %c0_i32_0 : i32, i32
  }
  func.func @transform_5(%arg0: i32) -> (i32, i32) {
    %c0_i32 = arith.constant 0 : i32
    %c0_i32_0 = arith.constant 0 : i32
    return %arg0, %c0_i32 : i32, i32
  }
}

</mosaic_0001>

<llo_original>
// kernel: tpu_custom_call.1
$region0: #{tpu_custom_call.1}
  #allocation0 [shape = 'u32[]', space=smem, size = 0x4, offset = 0x4, fixed_abs, tag = 'smem constant byte address 0x4 - core index']
  #allocation1 [shape = 'u32[144,128]{1,0:T(1,128)}', space=vmem, size = 0x12000, scoped, tag = 'internal scratch']
  #allocation2 [shape = 'f32[1,1]{1,0:T(1,128)S(1)}', space=vmem, size = 0x200, scoped, tag = 'scoped memory for tpu_custom_call.1']
  %s0 = inlined_call_operand.vmem [shape: f32[75,128], index: 0, kind: input, shape index: {}]
  %s1 = inlined_call_operand.vmem [shape: f32[128,16], index: 1, kind: input, shape index: {}]
  %s2 = inlined_call_operand.vmem [shape: f32[1,16], index: 2, kind: input, shape index: {}]
  %s3 = inlined_call_operand.vmem [shape: f32[16,4], index: 3, kind: input, shape index: {}]
  %s4 = inlined_call_operand.<no memory space> [shape: f32[1,1], index: 4, kind: input, shape index: {}]
  %s5 = inlined_call_operand.vmem [shape: f32[75,4], index: 5, kind: output, shape index: {}]
  %s6 = sld [smem:[#allocation0]]
  $region101: #{tpu_custom_call.1} parent=0
    _
  %s8 = ssub.s32 1, %s6
  %s9 = scalar_select 0, %s8, %s6
  %v10 = vstv %s4
  %11 = vst [vmem:[#allocation2] sm:$0x1] %v10
  $region1: #{tpu_custom_call.1} parent=0
    #allocation3 [shape = 'u8[32768]{0}', space=vmem, size = 0x8000, scoped, tag = 'output window, operand 0']
    loop: start=0, step=1, limit=5
    $region2: #{tpu_custom_call.1} parent=1 // loop_pre_header
      _
    $region3: #{tpu_custom_call.1} parent=1 // loop_header
      %s13 = sphi 0, %s17
      %p14 = scmp.ge.s32.totalorder %s13, 5
      %s23 = sphi 0, %s25
      %s26 = sphi 0, %s23
      %s27 = sphi 0, %s26
      %s43 = sphi 0, %s27
      %s47 = sphi 0, %s47
      %s49 = sphi 0, %s47
      %s50 = sphi 0, %s49
      %s64 = sphi 0, %s50
      %s68 = sphi 0, %s68
      %s70 = sphi 0, %s68
      %s71 = sphi 0, %s70
      %s85 = sphi 0, %s71
      %s89 = sphi 0, %s89
      %s91 = sphi 0, %s89
      %s92 = sphi 0, %s91
      %s106 = sphi 0, %s92
      %s110 = sphi 0, %s110
      %s112 = sphi 0, %s110
      %s113 = sphi 0, %s112
      %s127 = sphi 0, %s113
      %s133 = sphi 0, %s135
      %s136 = sphi 0, %s133
      %s137 = sphi 0, %s136
      %s153 = sphi 0, %s137
    $region4: #{tpu_custom_call.1} parent=1 // loop_header_branch
      %16 = sbr.rel (%p14) target = $region8
    $region5: #{tpu_custom_call.1} parent=1 // loop_body
      %s18 = ssub.s32 %s13, 1
      %s19 = ssub.s32 %s13, 2
      %s20 = sadd.s32 %s13, 1
      %s21 = ssub.s32 %s13, %s20
      %p22 = scmp.eq.s32.totalorder %s21, 0
      %s24 = sadd.s32 %s23, 1
      %s25 = scalar_select %p22, %s23, %s24
      %p28 = pneg %p22
      %p29 = scmp.eq.s32.totalorder %s13, 2
      %p30 = por %p28, %p29
      %p31 = scmp.ne.s32.totalorder %s23, %s26
      %p32 = scmp.eq.s32.totalorder %s13, 0
      %p33 = por %p31, %p32
      %p34 = scmp.ne.s32.totalorder %s23, %s26
      %p35 = scmp.eq.s32.totalorder %s18, 2
      %p36 = por %p34, %p35
      %p37 = scmp.ne.s32.totalorder %s26, %s27
      %p38 = scmp.eq.s32.totalorder %s18, 0
      %p39 = por %p37, %p38
      %p40 = scmp.ne.s32.totalorder %s26, %s27
      %p41 = scmp.eq.s32.totalorder %s19, 2
      %p42 = por %p40, %p41
      %p44 = scmp.ne.s32.totalorder %s27, %s43
      %p45 = scmp.eq.s32.totalorder %s19, 0
      %p46 = por %p44, %p45
      %s48 = sadd.s32 %s47, 1
      %p51 = scmp.eq.s32.totalorder %s13, 2
      %p52 = scmp.ne.s32.totalorder %s47, %s49
      %p53 = scmp.eq.s32.totalorder %s13, 0
      %p54 = por %p52, %p53
      %p55 = scmp.ne.s32.totalorder %s47, %s49
      %p56 = scmp.eq.s32.totalorder %s18, 2
      %p57 = por %p55, %p56
      %p58 = scmp.ne.s32.totalorder %s49, %s50
      %p59 = scmp.eq.s32.totalorder %s18, 0
      %p60 = por %p58, %p59
      %p61 = scmp.ne.s32.totalorder %s49, %s50
      %p62 = scmp.eq.s32.totalorder %s19, 2
      %p63 = por %p61, %p62
      %p65 = scmp.ne.s32.totalorder %s50, %s64
      %p66 = scmp.eq.s32.totalorder %s19, 0
      %p67 = por %p65, %p66
      %s69 = sadd.s32 %s68, 1
      %p72 = scmp.eq.s32.totalorder %s13, 2
      %p73 = scmp.ne.s32.totalorder %s68, %s70
      %p74 = scmp.eq.s32.totalorder %s13, 0
      %p75 = por %p73, %p74
      %p76 = scmp.ne.s32.totalorder %s68, %s70
      %p77 = scmp.eq.s32.totalorder %s18, 2
      %p78 = por %p76, %p77
      %p79 = scmp.ne.s32.totalorder %s70, %s71
      %p80 = scmp.eq.s32.totalorder %s18, 0
      %p81 = por %p79, %p80
      %p82 = scmp.ne.s32.totalorder %s70, %s71
      %p83 = scmp.eq.s32.totalorder %s19, 2
      %p84 = por %p82, %p83
      %p86 = scmp.ne.s32.totalorder %s71, %s85
      %p87 = scmp.eq.s32.totalorder %s19, 0
      %p88 = por %p86, %p87
      %s90 = sadd.s32 %s89, 1
      %p93 = scmp.eq.s32.totalorder %s13, 2
      %p94 = scmp.ne.s32.totalorder %s89, %s91
      %p95 = scmp.eq.s32.totalorder %s13, 0
      %p96 = por %p94, %p95
      %p97 = scmp.ne.s32.totalorder %s89, %s91
      %p98 = scmp.eq.s32.totalorder %s18, 2
      %p99 = por %p97, %p98
      %p100 = scmp.ne.s32.totalorder %s91, %s92
      %p101 = scmp.eq.s32.totalorder %s18, 0
      %p102 = por %p100, %p101
      %p103 = scmp.ne.s32.totalorder %s91, %s92
      %p104 = scmp.eq.s32.totalorder %s19, 2
      %p105 = por %p103, %p104
      %p107 = scmp.ne.s32.totalorder %s92, %s106
      %p108 = scmp.eq.s32.totalorder %s19, 0
      %p109 = por %p107, %p108
      %s111 = sadd.s32 %s110, 1
      %p114 = scmp.eq.s32.totalorder %s13, 2
      %p115 = scmp.ne.s32.totalorder %s110, %s112
      %p116 = scmp.eq.s32.totalorder %s13, 0
      %p117 = por %p115, %p116
      %p118 = scmp.ne.s32.totalorder %s110, %s112
      %p119 = scmp.eq.s32.totalorder %s18, 2
      %p120 = por %p118, %p119
      %p121 = scmp.ne.s32.totalorder %s112, %s113
      %p122 = scmp.eq.s32.totalorder %s18, 0
      %p123 = por %p121, %p122
      %p124 = scmp.ne.s32.totalorder %s112, %s113
      %p125 = scmp.eq.s32.totalorder %s19, 2
      %p126 = por %p124, %p125
      %p128 = scmp.ne.s32.totalorder %s113, %s127
      %p129 = scmp.eq.s32.totalorder %s19, 0
      %p130 = por %p128, %p129
      %s131 = ssub.s32 %s13, %s20
      %p132 = scmp.eq.s32.totalorder %s131, 0
      %s134 = sadd.s32 %s133, 1
      %s135 = scalar_select %p132, %s133, %s134
      %p138 = pneg %p132
      %p139 = scmp.eq.s32.totalorder %s13, 2
      %p140 = por %p138, %p139
      %p141 = scmp.ne.s32.totalorder %s133, %s136
      %p142 = scmp.eq.s32.totalorder %s13, 0
      %p143 = por %p141, %p142
      %p144 = scmp.ne.s32.totalorder %s133, %s136
      %p145 = scmp.eq.s32.totalorder %s18, 2
      %p146 = por %p144, %p145
      %p147 = scmp.ne.s32.totalorder %s136, %s137
      %p148 = scmp.eq.s32.totalorder %s18, 0
      %p149 = por %p147, %p148
      %p150 = scmp.ne.s32.totalorder %s136, %s137
      %p151 = scmp.eq.s32.totalorder %s19, 2
      %p152 = por %p150, %p151
      %p154 = scmp.ne.s32.totalorder %s137, %s153
      %p155 = scmp.eq.s32.totalorder %s19, 0
      %p156 = por %p154, %p155
      %p157 = scmp.le.s32.totalorder 1, %s13
      %p158 = scmp.lt.s32.totalorder %s13, 4
      %p159 = pnand %p157, %p158
      %p160 = pneg %p159
      // Predicated region
      $region9: #{tpu_custom_call.1} parent=5 // pred_check
        _
      $region10: #{tpu_custom_call.1} parent=5 // pred_check_branch
        %162 = sbr.rel (%p159) target = $region12
      $region11: #{tpu_custom_call.1} parent=5 // pred_region
        %s163 = ssub.s32 %s13, 1
        // Predicated region
        $region13: #{tpu_custom_call.1} parent=11 // pred_check
          %p164 = pneg %p60
        $region14: #{tpu_custom_call.1} parent=11 // pred_check_branch
          %166 = sbr.rel (%p164) target = $region16
        $region15: #{tpu_custom_call.1} parent=11 // pred_region
          _
        $region16: #{tpu_custom_call.1} parent=11 // pred_fallthru
          _
        // Predicated region
        $region17: #{tpu_custom_call.1} parent=11 // pred_check
          %p167 = pneg %p81
        $region18: #{tpu_custom_call.1} parent=11 // pred_check_branch
          %169 = sbr.rel (%p167) target = $region20
        $region19: #{tpu_custom_call.1} parent=11 // pred_region
          _
        $region20: #{tpu_custom_call.1} parent=11 // pred_fallthru
          _
        // Predicated region
        $region21: #{tpu_custom_call.1} parent=11 // pred_check
          %p170 = pneg %p102
        $region22: #{tpu_custom_call.1} parent=11 // pred_check_branch
          %172 = sbr.rel (%p170) target = $region24
        $region23: #{tpu_custom_call.1} parent=11 // pred_region
          _
        $region24: #{tpu_custom_call.1} parent=11 // pred_fallthru
          _
        // Predicated region
        $region25: #{tpu_custom_call.1} parent=11 // pred_check
          %p173 = pneg %p123
        $region26: #{tpu_custom_call.1} parent=11 // pred_check_branch
          %175 = sbr.rel (%p173) target = $region28
        $region27: #{tpu_custom_call.1} parent=11 // pred_region
          _
        $region28: #{tpu_custom_call.1} parent=11 // pred_fallthru
          _
      $region12: #{tpu_custom_call.1} parent=5 // pred_fallthru
        _
      %p176 = scmp.lt.s32.totalorder %s13, 3
      // Predicated region
      $region29: #{tpu_custom_call.1} parent=5 // pred_check
        %p177 = pneg %p176
      $region30: #{tpu_custom_call.1} parent=5 // pred_check_branch
        %179 = sbr.rel (%p177) target = $region32
      $region31: #{tpu_custom_call.1} parent=5 // pred_region
        // Predicated region
        $region33: #{tpu_custom_call.1} parent=31 // pred_check
          %p180 = pneg %p33
        $region34: #{tpu_custom_call.1} parent=31 // pred_check_branch
          %182 = sbr.rel (%p180) target = $region36
        $region35: #{tpu_custom_call.1} parent=31 // pred_region
          %s183 = smul.u32 4, %s13
          %s184 = ssub.s32 10, %s183
          %p185 = scmp.lt.s32.totalorder %s184, 4
          %s186 = scalar_select %p185, %s184, 4
          %s187 = smul.u32 128, %s186
          %p188 = scmp.lt.s32.totalorder %s183, 9
          %s189 = scalar_select %p188, %s183, 9
          %s190 = smul.addr %s189, 8
          %s191 = scalar_lea.vmem %s0, %s190
          %s192 = smul.u32 4, %s13
          %s193 = ssub.s32 10, %s192
          %p194 = scmp.lt.s32.totalorder %s193, 4
          %s195 = scalar_select %p194, %s193, 4
          %s196 = smul.u32 128, %s195
        $region36: #{tpu_custom_call.1} parent=31 // pred_fallthru
          _
      $region32: #{tpu_custom_call.1} parent=5 // pred_fallthru
        _
      %p197 = scmp.le.s32.totalorder 1, %s13
      %p198 = scmp.lt.s32.totalorder %s13, 4
      %p199 = pnand %p197, %p198
      %p200 = pneg %p199
      // Predicated region
      $region37: #{tpu_custom_call.1} parent=5 // pred_check
        _
      $region38: #{tpu_custom_call.1} parent=5 // pred_check_branch
        %202 = sbr.rel (%p199) target = $region40
      $region39: #{tpu_custom_call.1} parent=5 // pred_region
        %s203 = ssub.s32 %s13, 1
        %s204 = smul.u32 4, %s18
        %s205 = ssub.s32 10, %s204
        %p206 = scmp.lt.s32.totalorder %s205, 4
        %s207 = scalar_select %p206, %s205, 4
        %s208 = smul.u32 128, %s207
        %p209 = scmp.lt.s32.totalorder %s204, 9
        %s210 = scalar_select %p209, %s204, 9
        %s211 = smul.addr %s210, 8
        %s212 = scalar_lea.vmem %s0, %s211
        %p213 = pneg %p39
        %p214 = pneg %p36
        %p215 = pneg %p60
        %p216 = pneg %p57
        %p217 = pneg %p81
        %p218 = pneg %p78
        %p219 = pneg %p102
        %p220 = pneg %p99
        %p221 = pneg %p123
        %p222 = pneg %p120
        %p223 = pneg %p149
        %p224 = pneg %p146
        %s225 = sand.u32 %s136, 1
        %s226 = sand.u32 %s136, 1
        %s227 = smul.addr %s226, 32
        %s228 = scalar_lea.vmem [#allocation3], %s227
        %s229 = smul.u32 4, %s18
        %s230 = ssub.s32 10, %s229
        %p231 = scmp.lt.s32.totalorder %s230, 4
        %s232 = scalar_select %p231, %s230, 4
        %s233 = smul.u32 128, %s232
        %p234 = scmp.lt.s32.totalorder %s229, 9
        %s235 = scalar_select %p234, %s229, 9
        %s236 = smul.addr %s235, 8
        %s237 = scalar_lea.vmem %s0, %s236
        %s238 = smul.u32 4, %s18
        %s239 = ssub.s32 10, %s238
        %p240 = scmp.lt.s32.totalorder %s239, 4
        %s241 = scalar_select %p240, %s239, 4
        %s242 = smul.u32 128, %s241
        %s243 = smul.u32 4, %s18
        %s244 = ssub.s32 10, %s243
        %p245 = scmp.lt.s32.totalorder %s244, 4
        %s246 = scalar_select %p245, %s244, 4
        %s247 = smul.u32 128, %s246
        %v248 = vld [vmem:[%s237] sm:$0xff]
        %v249 = vld [vmem:[%s237 + $0x8] sm:$0xff]
        %v250 = vld [vmem:[%s237 + $0x10] sm:$0xff]
        %v251 = vld [vmem:[%s237 + $0x18] sm:$0xff]
        %v252 = vld [vmem:[%s1] sm:$0xff]
        %v253 = vld [vmem:[%s1 + $0x8] sm:$0xff]
        %v254 = vld [vmem:[%s1 + $0x10] sm:$0xff]
        %v255 = vld [vmem:[%s1 + $0x18] sm:$0xff]
        %v256 = vld [vmem:[%s1 + $0x20] sm:$0xff]
        %v257 = vld [vmem:[%s1 + $0x28] sm:$0xff]
        %v258 = vld [vmem:[%s1 + $0x30] sm:$0xff]
        %v259 = vld [vmem:[%s1 + $0x38] sm:$0xff]
        %v260 = vld [vmem:[%s1 + $0x40] sm:$0xff]
        %v261 = vld [vmem:[%s1 + $0x48] sm:$0xff]
        %v262 = vld [vmem:[%s1 + $0x50] sm:$0xff]
        %v263 = vld [vmem:[%s1 + $0x58] sm:$0xff]
        %v264 = vld [vmem:[%s1 + $0x60] sm:$0xff]
        %v265 = vld [vmem:[%s1 + $0x68] sm:$0xff]
        %v266 = vld [vmem:[%s1 + $0x70] sm:$0xff]
        %v267 = vld [vmem:[%s1 + $0x78] sm:$0xff]
        %v268 = vld [vmem:[%s2] sm:$0x1]
        %v270 = vlaneseq
        %v271 = vshrl.u32 %v270, 7
        %v272 = vsub.s32 0, %v271
        %v273 = vrot.slane %v268, %v272
        %275 = vmatprep.subr.mxu0 0.0
        %276 = vmatpush1.msra.mxu0 %v252
        %277 = vmatprep.subr.mxu0 0.0
        %278 = vmatpush1.msra.mxu0 %v253
        %279 = vmatprep.subr.mxu0 0.0
        %280 = vmatpush1.msra.mxu0 %v254
        %281 = vmatprep.subr.mxu0 0.0
        %282 = vmatpush1.msra.mxu0 %v255
        %283 = vmatprep.subr.mxu0 0.0
        %284 = vmatpush1.msra.mxu0 %v256
        %285 = vmatprep.subr.mxu0 0.0
        %286 = vmatpush1.msra.mxu0 %v257
        %287 = vmatprep.subr.mxu0 0.0
        %288 = vmatpush1.msra.mxu0 %v258
        %289 = vmatprep.subr.mxu0 0.0
        %290 = vmatpush1.msra.mxu0 %v259
        %291 = vmatprep.subr.mxu0 0.0
        %292 = vmatpush1.msra.mxu0 %v260
        %293 = vmatprep.subr.mxu0 0.0
        %294 = vmatpush1.msra.mxu0 %v261
        %295 = vmatprep.subr.mxu0 0.0
        %296 = vmatpush1.msra.mxu0 %v262
        %297 = vmatprep.subr.mxu0 0.0
        %298 = vmatpush1.msra.mxu0 %v263
        %299 = vmatprep.subr.mxu0 0.0
        %300 = vmatpush1.msra.mxu0 %v264
        %301 = vmatprep.subr.mxu0 0.0
        %302 = vmatpush1.msra.mxu0 %v265
        %303 = vmatprep.subr.mxu0 0.0
        %304 = vmatpush1.msra.mxu0 %v266
        %305 = vmatprep.subr.mxu0 0.0
        %306 = vmatpush1.msra.mxu0 %v267
        %307 = vmatprep.subr.mxu0 0.0
        %308 = vmatpush1.msra.mxu0 0.0
        %309 = vmatprep.subr.mxu0 0.0
        %310 = vmatpush1.msra.mxu0 0.0
        %311 = vmatprep.subr.mxu0 0.0
        %312 = vmatpush1.msra.mxu0 0.0
        %313 = vmatprep.subr.mxu0 0.0
        %314 = vmatpush1.msra.mxu0 0.0
        %315 = vmatprep.subr.mxu0 0.0
        %316 = vmatpush1.msra.mxu0 0.0
        %317 = vmatprep.subr.mxu0 0.0
        %318 = vmatpush1.msra.mxu0 0.0
        %319 = vmatprep.subr.mxu0 0.0
        %320 = vmatpush1.msra.mxu0 0.0
        %321 = vmatprep.subr.mxu0 0.0
        %322 = vmatpush1.msra.mxu0 0.0
        %323 = vmatprep.subr.mxu0 0.0
        %324 = vmatpush1.msra.mxu0 0.0
        %325 = vmatprep.subr.mxu0 0.0
        %326 = vmatpush1.msra.mxu0 0.0
        %327 = vmatprep.subr.mxu0 0.0
        %328 = vmatpush1.msra.mxu0 0.0
        %329 = vmatprep.subr.mxu0 0.0
        %330 = vmatpush1.msra.mxu0 0.0
        %331 = vmatprep.subr.mxu0 0.0
        %332 = vmatpush1.msra.mxu0 0.0
        %333 = vmatprep.subr.mxu0 0.0
        %334 = vmatpush1.msra.mxu0 0.0
        %335 = vmatprep.subr.mxu0 0.0
        %336 = vmatpush1.msra.mxu0 0.0
        %337 = vmatprep.subr.mxu0 0.0
        %338 = vmatpush1.msra.mxu0 0.0
        %339 = vmatprep.mubr.f32.mxu0 0.0
        %340 = vmatmul.mubr.f32.gmra.mrb[0].mxu0 %v248
        %v341 = vpop.f32.mrb[0].mxu0
        %v342 = vadd.f32 %v273, %v341
        %v343 = vpop.f32.mrb[0].mxu0
        %344 = vmatprep.mubr.f32.mxu0 0.0
        %345 = vmatmul.mubr.f32.gmra.mrb[0].mxu0 %v249
        %v346 = vpop.f32.mrb[0].mxu0
        %v347 = vadd.f32 %v273, %v346
        %v348 = vpop.f32.mrb[0].mxu0
        %349 = vmatprep.mubr.f32.mxu0 0.0
        %350 = vmatmul.mubr.f32.gmra.mrb[0].mxu0 %v250
        %v351 = vpop.f32.mrb[0].mxu0
        %v352 = vadd.f32 %v273, %v351
        %v353 = vpop.f32.mrb[0].mxu0
        %354 = vmatprep.mubr.f32.mxu0 0.0
        %355 = vmatmul.mubr.f32.gmra.mrb[0].mxu0 %v251
        %v356 = vpop.f32.mrb[0].mxu0
        %v357 = vadd.f32 %v273, %v356
        %v358 = vpop.f32.mrb[0].mxu0
        %359 = vdwg.mxu0
        %vm360 = vcmp.ge.f32.partialorder %v342, 0.0
        %vm361 = vcmp.ge.f32.partialorder %v347, 0.0
        %vm362 = vcmp.ge.f32.partialorder %v352, 0.0
        %vm363 = vcmp.ge.f32.partialorder %v357, 0.0
        %v364 = vmul.f32 %v342, 0.2
        %v365 = vmul.f32 %v347, 0.2
        %v366 = vmul.f32 %v352, 0.2
        %v367 = vmul.f32 %v357, 0.2
        %v368 = vsel %vm360, %v342, %v364
        %v369 = vsel %vm361, %v347, %v365
        %v370 = vsel %vm362, %v352, %v366
        %v371 = vsel %vm363, %v357, %v367
        %v372 = vld [vmem:[%s3] sm:$0xff]
        %v373 = vld [vmem:[%s3 + $0x8] sm:$0xff]
        %v374 = vld [vmem:[#allocation2] sm:$0x1]
        %v376 = vlaneseq
        %v377 = vshrl.u32 %v376, 7
        %v378 = vsub.s32 0, %v377
        %v379 = vrot.slane %v374, %v378
        %380 = vset.pattern.permute.xlu0 0
        %381 = vperm.xlu0 %380, %v379
        %v382 = vpop.permute.xlu0 %381
        %vm384 = vcmask 130048
        %v386 = vsel %vm384, %v368, 0
        %v389 = vsel %vm384, %v369, 0
        %v392 = vsel %vm384, %v370, 0
        %v395 = vsel %vm384, %v371, 0
        %397 = vmatprep.subr.mxu0 0.0
        %398 = vmatpush1.msra.mxu0 %v372
        %399 = vmatprep.subr.mxu0 0.0
        %400 = vmatpush1.msra.mxu0 %v373
        %401 = vmatprep.subr.mxu0 0.0
        %402 = vmatpush1.msra.mxu0 0.0
        %403 = vmatprep.subr.mxu0 0.0
        %404 = vmatpush1.msra.mxu0 0.0
        %405 = vmatprep.subr.mxu0 0.0
        %406 = vmatpush1.msra.mxu0 0.0
        %407 = vmatprep.subr.mxu0 0.0
        %408 = vmatpush1.msra.mxu0 0.0
        %409 = vmatprep.subr.mxu0 0.0
        %410 = vmatpush1.msra.mxu0 0.0
        %411 = vmatprep.subr.mxu0 0.0
        %412 = vmatpush1.msra.mxu0 0.0
        %413 = vmatprep.subr.mxu0 0.0
        %414 = vmatpush1.msra.mxu0 0.0
        %415 = vmatprep.subr.mxu0 0.0
        %416 = vmatpush1.msra.mxu0 0.0
        %417 = vmatprep.subr.mxu0 0.0
        %418 = vmatpush1.msra.mxu0 0.0
        %419 = vmatprep.subr.mxu0 0.0
        %420 = vmatpush1.msra.mxu0 0.0
        %421 = vmatprep.subr.mxu0 0.0
        %422 = vmatpush1.msra.mxu0 0.0
        %423 = vmatprep.subr.mxu0 0.0
        %424 = vmatpush1.msra.mxu0 0.0
        %425 = vmatprep.subr.mxu0 0.0
        %426 = vmatpush1.msra.mxu0 0.0
        %427 = vmatprep.subr.mxu0 0.0
        %428 = vmatpush1.msra.mxu0 0.0
        %429 = vmatprep.subr.mxu0 0.0
        %430 = vmatpush1.msra.mxu0 0.0
        %431 = vmatprep.subr.mxu0 0.0
        %432 = vmatpush1.msra.mxu0 0.0
        %433 = vmatprep.subr.mxu0 0.0
        %434 = vmatpush1.msra.mxu0 0.0
        %435 = vmatprep.subr.mxu0 0.0
        %436 = vmatpush1.msra.mxu0 0.0
        %437 = vmatprep.subr.mxu0 0.0
        %438 = vmatpush1.msra.mxu0 0.0
        %439 = vmatprep.subr.mxu0 0.0
        %440 = vmatpush1.msra.mxu0 0.0
        %441 = vmatprep.subr.mxu0 0.0
        %442 = vmatpush1.msra.mxu0 0.0
        %443 = vmatprep.subr.mxu0 0.0
        %444 = vmatpush1.msra.mxu0 0.0
        %445 = vmatprep.subr.mxu0 0.0
        %446 = vmatpush1.msra.mxu0 0.0
        %447 = vmatprep.subr.mxu0 0.0
        %448 = vmatpush1.msra.mxu0 0.0
        %449 = vmatprep.subr.mxu0 0.0
        %450 = vmatpush1.msra.mxu0 0.0
        %451 = vmatprep.subr.mxu0 0.0
        %452 = vmatpush1.msra.mxu0 0.0
        %453 = vmatprep.subr.mxu0 0.0
        %454 = vmatpush1.msra.mxu0 0.0
        %455 = vmatprep.subr.mxu0 0.0
        %456 = vmatpush1.msra.mxu0 0.0
        %457 = vmatprep.subr.mxu0 0.0
        %458 = vmatpush1.msra.mxu0 0.0
        %459 = vmatprep.subr.mxu0 0.0
        %460 = vmatpush1.msra.mxu0 0.0
        %461 = vmatprep.mubr.f32.mxu0 0.0
        %462 = vmatmul.mubr.f32.gmra.mrb[0].mxu0 %v386
        %v463 = vpop.f32.mrb[0].mxu0
        %v464 = vadd.f32 %v382, %v463
        %v465 = vpop.f32.mrb[0].mxu0
        %466 = vmatprep.mubr.f32.mxu0 0.0
        %467 = vmatmul.mubr.f32.gmra.mrb[0].mxu0 %v389
        %v468 = vpop.f32.mrb[0].mxu0
        %v469 = vadd.f32 %v382, %v468
        %v470 = vpop.f32.mrb[0].mxu0
        %471 = vmatprep.mubr.f32.mxu0 0.0
        %472 = vmatmul.mubr.f32.gmra.mrb[0].mxu0 %v392
        %v473 = vpop.f32.mrb[0].mxu0
        %v474 = vadd.f32 %v382, %v473
        %v475 = vpop.f32.mrb[0].mxu0
        %476 = vmatprep.mubr.f32.mxu0 0.0
        %477 = vmatmul.mubr.f32.gmra.mrb[0].mxu0 %v395
        %v478 = vpop.f32.mrb[0].mxu0
        %v479 = vadd.f32 %v382, %v478
        %v480 = vpop.f32.mrb[0].mxu0
        %481 = vdwg.mxu0
        %vm482 = vcmask 31744
        %483 = vst.msk [vmem:[%s228] sm:$0xff] %vm482, %v464
        %484 = vst.msk [vmem:[%s228 + $0x8] sm:$0xff] %vm482, %v469
        %485 = vst.msk [vmem:[%s228 + $0x10] sm:$0xff] %vm482, %v474
        %486 = vst.msk [vmem:[%s228 + $0x18] sm:$0xff] %vm482, %v479
        %s487 = sand.u32 %s136, 1
        %s488 = sand.u32 %s136, 1
        %s489 = smul.addr %s488, 32
        %s490 = scalar_lea.vmem [#allocation3], %s489
        // Predicated region
        $region41: #{tpu_custom_call.1} parent=39 // pred_check
          %p491 = pneg %p146
        $region42: #{tpu_custom_call.1} parent=39 // pred_check_branch
          %493 = sbr.rel (%p491) target = $region44
        $region43: #{tpu_custom_call.1} parent=39 // pred_region
          %s494 = smul.u32 4, %s18
          %s495 = ssub.s32 10, %s494
          %p496 = scmp.lt.s32.totalorder %s495, 4
          %s497 = scalar_select %p496, %s495, 4
          %s498 = smul.u32 128, %s497
          %p499 = scmp.ne.s32.totalorder 0, %s498
          %s500 = smul.addr %s494, 8
          %s501 = scalar_lea.vmem %s5, %s500
          // Predicated region
          $region45: #{tpu_custom_call.1} parent=43 // pred_check
            %p502 = pneg %p499
          $region46: #{tpu_custom_call.1} parent=43 // pred_check_branch
            %504 = sbr.rel (%p502) target = $region48
          $region47: #{tpu_custom_call.1} parent=43 // pred_region
            // Predicated region
            $region49: #{tpu_custom_call.1} parent=47 // pred_check
              _
            $region50: #{tpu_custom_call.1} parent=47 // pred_check_branch
              %506 = sbr.rel (0) target = $region52
            $region51: #{tpu_custom_call.1} parent=47 // pred_region
              // Predicated region
              $region71: #{tpu_custom_call.1} parent=51 // pred_check
                _
              $region72: #{tpu_custom_call.1} parent=51 // pred_check_branch
                %561 = sbr.rel (0) target = $region74
              $region73: #{tpu_custom_call.1} parent=51 // pred_region
                %s562 = sshrl.u32 %s497, 2
                // While loop
                $region75: #{tpu_custom_call.1} parent=73 // loop_pre_header
                  _
                $region76: #{tpu_custom_call.1} parent=73 // loop_header
                  %s564 = sphi 0, %s566
                  %p565 = scmp.ge.s32.totalorder %s564, %s562
                  %s569 = sphi 0, %s582
                  %s570 = sphi %s490, %s585
                  %s571 = sphi %s501, %s586
                $region77: #{tpu_custom_call.1} parent=73 // loop_header_branch
                  %568 = sbr.rel (%p565) target = $region81
                $region78: #{tpu_custom_call.1} parent=73 // loop_body
                  %v572 = vld [vmem:[%s570] sm:$0xff]
                  %573 = vst [vmem:[%s571] sm:$0xff] %v572
                  %v574 = vld [vmem:[%s570 + $0x8] sm:$0xff]
                  %575 = vst [vmem:[%s571 + $0x8] sm:$0xff] %v574
                  %v576 = vld [vmem:[%s570 + $0x10] sm:$0xff]
                  %577 = vst [vmem:[%s571 + $0x10] sm:$0xff] %v576
                  %v578 = vld [vmem:[%s570 + $0x18] sm:$0xff]
                  %579 = vst [vmem:[%s571 + $0x18] sm:$0xff] %v578
                  %s580 = sadd.s32 1, %s569
                  %p581 = scmp.ge.s32.totalorder %s580, %s562
                  %s582 = scalar_select %p581, 0, %s580
                  %s583 = smul.u32 %s582, 32
                  %s584 = smul.u32 %s582, 32
                  %s585 = scalar_lea.vmem %s490, %s583 [#allocation3]
                  %s586 = scalar_lea.vmem %s501, %s584
                $region79: #{tpu_custom_call.1} parent=73 // loop_footer
                  %s566 = sadd.s32 %s564, 1
                $region80: #{tpu_custom_call.1} parent=73 // loop_footer_branch
                  %563 = sbr.rel target = $region76
                $region81: #{tpu_custom_call.1} parent=73 // loop_exit
                  _
                %s587 = sshrl.u32 %s497, 2
                %s588 = sand.u32 %s497, 3
                %s589 = smul.u32 %s587, 4
                %s590 = smul.u32 8, %s589
                %s591 = scalar_lea.vmem %s490, %s590 [#allocation3]
                %s592 = smul.u32 8, %s589
                %s593 = scalar_lea.vmem %s501, %s592
                // While loop
                $region82: #{tpu_custom_call.1} parent=73 // loop_pre_header
                  _
                $region83: #{tpu_custom_call.1} parent=73 // loop_header
                  %s595 = sphi 0, %s597
                  %p596 = scmp.ge.s32.totalorder %s595, %s588
                  %s600 = sphi 0, %s607
                  %s601 = sphi %s591, %s610
                  %s602 = sphi %s593, %s611
                $region84: #{tpu_custom_call.1} parent=73 // loop_header_branch
                  %599 = sbr.rel (%p596) target = $region88
                $region85: #{tpu_custom_call.1} parent=73 // loop_body
                  %v603 = vld [vmem:[%s601] sm:$0xff]
                  %604 = vst [vmem:[%s602] sm:$0xff] %v603
                  %s605 = sadd.s32 1, %s600
                  %p606 = scmp.ge.s32.totalorder %s605, %s588
                  %s607 = scalar_select %p606, 0, %s605
                  %s608 = smul.u32 %s607, 8
                  %s609 = smul.u32 %s607, 8
                  %s610 = scalar_lea.vmem %s591, %s608 [#allocation3]
                  %s611 = scalar_lea.vmem %s593, %s609
                $region86: #{tpu_custom_call.1} parent=73 // loop_footer
                  %s597 = sadd.s32 %s595, 1
                $region87: #{tpu_custom_call.1} parent=73 // loop_footer_branch
                  %594 = sbr.rel target = $region83
                $region88: #{tpu_custom_call.1} parent=73 // loop_exit
                  _
              $region74: #{tpu_custom_call.1} parent=51 // pred_fallthru
                _
              // Predicated region
              $region89: #{tpu_custom_call.1} parent=51 // pred_check
                _
              $region90: #{tpu_custom_call.1} parent=51 // pred_check_branch
                %613 = sbr.rel target = $region92
              $region91: #{tpu_custom_call.1} parent=51 // pred_region
                _
              $region92: #{tpu_custom_call.1} parent=51 // pred_fallthru
                _
            $region52: #{tpu_custom_call.1} parent=47 // pred_fallthru
              _
            // Predicated region
            $region53: #{tpu_custom_call.1} parent=47 // pred_check
              _
            $region54: #{tpu_custom_call.1} parent=47 // pred_check_branch
              %508 = sbr.rel target = $region56
            $region55: #{tpu_custom_call.1} parent=47 // pred_region
              %s510 = sshrl.u32 %s497, 2
              // While loop
              $region57: #{tpu_custom_call.1} parent=55 // loop_pre_header
                _
              $region58: #{tpu_custom_call.1} parent=55 // loop_header
                %s512 = sphi 0, %s514
                %p513 = scmp.ge.s32.totalorder %s512, %s510
                %s517 = sphi 0, %s530
                %s518 = sphi %s490, %s533
                %s519 = sphi %s501, %s534
              $region59: #{tpu_custom_call.1} parent=55 // loop_header_branch
                %516 = sbr.rel (%p513) target = $region63
              $region60: #{tpu_custom_call.1} parent=55 // loop_body
                %v520 = vld [vmem:[%s518] sm:$0xff]
                %521 = vst [vmem:[%s519] sm:$0xff] %v520
                %v522 = vld [vmem:[%s518 + $0x8] sm:$0xff]
                %523 = vst [vmem:[%s519 + $0x8] sm:$0xff] %v522
                %v524 = vld [vmem:[%s518 + $0x10] sm:$0xff]
                %525 = vst [vmem:[%s519 + $0x10] sm:$0xff] %v524
                %v526 = vld [vmem:[%s518 + $0x18] sm:$0xff]
                %527 = vst [vmem:[%s519 + $0x18] sm:$0xff] %v526
                %s528 = sadd.s32 1, %s517
                %p529 = scmp.ge.s32.totalorder %s528, %s510
                %s530 = scalar_select %p529, 0, %s528
                %s531 = smul.u32 %s530, 32
                %s532 = smul.u32 %s530, 32
                %s533 = scalar_lea.vmem %s490, %s531 [#allocation3]
                %s534 = scalar_lea.vmem %s501, %s532
              $region61: #{tpu_custom_call.1} parent=55 // loop_footer
                %s514 = sadd.s32 %s512, 1
              $region62: #{tpu_custom_call.1} parent=55 // loop_footer_branch
                %511 = sbr.rel target = $region58
              $region63: #{tpu_custom_call.1} parent=55 // loop_exit
                _
              %s535 = sshrl.u32 %s497, 2
              %s536 = sand.u32 %s497, 3
              %s537 = smul.u32 %s535, 4
              %s538 = smul.u32 8, %s537
              %s539 = scalar_lea.vmem %s490, %s538 [#allocation3]
              %s540 = smul.u32 8, %s537
              %s541 = scalar_lea.vmem %s501, %s540
              // While loop
              $region64: #{tpu_custom_call.1} parent=55 // loop_pre_header
                _
              $region65: #{tpu_custom_call.1} parent=55 // loop_header
                %s543 = sphi 0, %s545
                %p544 = scmp.ge.s32.totalorder %s543, %s536
                %s548 = sphi 0, %s555
                %s549 = sphi %s539, %s558
                %s550 = sphi %s541, %s559
              $region66: #{tpu_custom_call.1} parent=55 // loop_header_branch
                %547 = sbr.rel (%p544) target = $region70
              $region67: #{tpu_custom_call.1} parent=55 // loop_body
                %v551 = vld [vmem:[%s549] sm:$0xff]
                %552 = vst [vmem:[%s550] sm:$0xff] %v551
                %s553 = sadd.s32 1, %s548
                %p554 = scmp.ge.s32.totalorder %s553, %s536
                %s555 = scalar_select %p554, 0, %s553
                %s556 = smul.u32 %s555, 8
                %s557 = smul.u32 %s555, 8
                %s558 = scalar_lea.vmem %s539, %s556 [#allocation3]
                %s559 = scalar_lea.vmem %s541, %s557
              $region68: #{tpu_custom_call.1} parent=55 // loop_footer
                %s545 = sadd.s32 %s543, 1
              $region69: #{tpu_custom_call.1} parent=55 // loop_footer_branch
                %542 = sbr.rel target = $region65
              $region70: #{tpu_custom_call.1} parent=55 // loop_exit
                _
            $region56: #{tpu_custom_call.1} parent=47 // pred_fallthru
              _
          $region48: #{tpu_custom_call.1} parent=43 // pred_fallthru
            _
          %614 = vnop
        $region44: #{tpu_custom_call.1} parent=39 // pred_fallthru
          _
      $region40: #{tpu_custom_call.1} parent=5 // pred_fallthru
        _
      %p615 = scmp.le.s32.totalorder 2, %s13
      // Predicated region
      $region93: #{tpu_custom_call.1} parent=5 // pred_check
        %p616 = pneg %p615
      $region94: #{tpu_custom_call.1} parent=5 // pred_check_branch
        %618 = sbr.rel (%p616) target = $region96
      $region95: #{tpu_custom_call.1} parent=5 // pred_region
        %s619 = ssub.s32 %s13, 2
        // Predicated region
        $region97: #{tpu_custom_call.1} parent=95 // pred_check
          %p620 = pneg %p152
        $region98: #{tpu_custom_call.1} parent=95 // pred_check_branch
          %622 = sbr.rel (%p620) target = $region100
        $region99: #{tpu_custom_call.1} parent=95 // pred_region
          %s623 = sand.u32 %s137, 1
          %s624 = sand.u32 %s137, 1
          %s625 = smul.addr %s624, 32
          %s626 = scalar_lea.vmem [#allocation3], %s625
        $region100: #{tpu_custom_call.1} parent=95 // pred_fallthru
          _
      $region96: #{tpu_custom_call.1} parent=5 // pred_fallthru
        _
    $region6: #{tpu_custom_call.1} parent=1 // loop_footer
      %s17 = sadd.s32 1, %s13
    $region7: #{tpu_custom_call.1} parent=1 // loop_footer_branch
      %12 = sbr.rel target = $region3
    $region8: #{tpu_custom_call.1} parent=1 // loop_exit
      _

</llo_original>
